<compile_context>
chip_gen: v5e
topology: v5e:2x2
jax: 0.10.0
libtpu: 0.0.40
codegen_flags: <defaults>
</compile_context>

<pallas_src>
import functools

import jax
import jax.numpy as jnp
from jax import lax
from jax.experimental import pallas as pl
from jax.experimental.pallas import tpu as pltpu

N_ITER = 30  # bisection iterations; interval shrinks 2^-30 — below f32 tau precision


def _round_up(x, m):
    return (x + m - 1) // m * m


def _entmax_bisect_kernel(x_ref, alpha_ref, o_ref, *, true_d):
    """alpha-entmax along the last axis for a tile of rows.

    x_ref:     (TR, Kp)  attention scores tile (Kp may include -inf-like padding)
    alpha_ref: (TR, 1)   per-row alpha (in (1, 2])
    o_ref:     (TR, Kp)  entmax probabilities
    true_d:    the un-padded key length (static), used for tau_hi exactly as PyTorch does
    """
    X = x_ref[...].astype(jnp.float32)              # (TR, Kp)
    alpha = alpha_ref[...].astype(jnp.float32)      # (TR, 1)

    am1 = alpha - 1.0                               # (TR, 1), > 0
    inv_am1 = 1.0 / am1                             # (TR, 1), > 0

    # X <- X * (alpha - 1)
    X = X * am1

    # p(Z) = clamp(Z, min=0) ** (1 / (alpha - 1)), computed safely via exp/log.
    # Exponent is clamped to avoid inf when alpha is extremely close to 1 and
    # rounding pushes Z slightly above 1.
    def _p(Z):
        Zc = jnp.maximum(Z, 0.0)
        safe = jnp.maximum(Zc, 1e-30)
        expo = jnp.minimum(inv_am1 * jnp.log(safe), 80.0)
        val = jnp.exp(expo)
        return jnp.where(Zc > 0.0, val, 0.0)

    max_val = jnp.max(X, axis=-1, keepdims=True)            # (TR, 1)
    # _gp(1, alpha) = 1 ** (alpha - 1) = 1
    tau_lo = max_val - 1.0
    # _gp(1/d, alpha) = (1/d) ** (alpha - 1)  (d = true, un-padded key length)
    tau_hi = max_val - jnp.exp(am1 * jnp.log(1.0 / true_d))
    dm = tau_hi - tau_lo

    # f_lo = sum(_p(X - tau_lo)) - 1 >= 0 always (the max element alone contributes
    # exactly 1), so the PyTorch mask (f_m * f_lo >= 0) reduces to (f_m >= 0) and we
    # can skip the f_lo evaluation entirely.  Carry only (tau_lo, dm): no (TR, K)
    # array lives across loop iterations.
    def body(_, carry):
        tau_lo, dm = carry
        dm = dm * 0.5
        tau_m = tau_lo + dm
        f_m = jnp.sum(_p(X - tau_m), axis=-1, keepdims=True) - 1.0   # (TR, 1)
        tau_lo = jnp.where(f_m >= 0.0, tau_m, tau_lo)
        return tau_lo, dm

    tau_lo, dm = lax.fori_loop(0, N_ITER, body, (tau_lo, dm))

    # Evaluate p once at the refined tau (within 2^-30 of PyTorch's last midpoint).
    p = _p(X - tau_lo)                                               # (TR, Kp)

    # ensure_sum_one=True: approx reciprocal (EUP) + one Newton step for f32 accuracy.
    s = jnp.sum(p, axis=-1, keepdims=True)                           # (TR, 1)
    inv = pl.reciprocal(s, approx=True)
    inv = inv * (2.0 - s * inv)
    o_ref[...] = (p * inv).astype(o_ref.dtype)


@functools.partial(jax.jit, static_argnames=("row_tile",))
def entmax_alpha_forward(att_scores, alpha, *, row_tile=256):
    """Pallas forward of EntmaxAlpha.

    att_scores: (B, H, Q, K) float
    alpha:      (H,) float  (head_count == H; module default head_count=1)
    """
    B, H, Q, K = att_scores.shape

    # Replicate the PyTorch expanded_alpha construction exactly:
    #   alpha.unsqueeze(0).unsqueeze(-1).repeat(1, H, 1, 1).expand(B, -1, Q, 1)
    # NOTE: this PyTorch quirk only broadcasts when H == 1 or H == Q; when H == Q the
    # alpha ends up indexed by the *query* position, matching the original module.
    a = alpha[None, :, None]                       # (1, H, 1)
    a = jnp.tile(a[None, ...], (1, H, 1, 1))       # (1, H, H, 1)
    expanded_alpha = jnp.broadcast_to(a, (B, H, Q, 1)).astype(jnp.float32)

    R = B * H * Q
    x2d = att_scores.reshape(R, K)
    a2d = expanded_alpha.reshape(R, 1)

    # Lane-align K to a multiple of 128: padded columns get a huge negative score so
    # their probability is exactly 0; they are sliced off afterwards.
    Kp = max(_round_up(K, 128), 128)
    if Kp != K:
        pad_cols = jnp.full((R, Kp - K), -1e30, dtype=x2d.dtype)
        x2d = jnp.concatenate([x2d, pad_cols], axis=-1)

    # Effective row tile: large for real workloads, shrunk for tiny inputs; rows are
    # padded (not asserted) to a multiple of the tile.
    tr = min(row_tile, _round_up(R, 8))
    tr = max(_round_up(tr, 8), 8)
    Rp = _round_up(R, tr)
    if Rp != R:
        x2d = jnp.concatenate(
            [x2d, jnp.zeros((Rp - R, Kp), dtype=x2d.dtype)], axis=0)
        a2d = jnp.concatenate(
            [a2d, jnp.full((Rp - R, 1), 1.5, dtype=a2d.dtype)], axis=0)

    grid = (Rp // tr,)

    # Scoped VMEM sized to the tile: ~10 live f32 copies of (tr, Kp) covers the
    # double-buffered in/out blocks plus in-kernel temporaries.  Cap at 64 MiB so the
    # same setting is safe on v7x (64 MiB physical VMEM per TensorCore).
    block_bytes = tr * Kp * 4
    vmem_limit = int(min(64 * 1024 * 1024, max(32 * 1024 * 1024, 10 * block_bytes)))

    out2d = pl.pallas_call(
        functools.partial(_entmax_bisect_kernel, true_d=K),
        out_shape=jax.ShapeDtypeStruct((Rp, Kp), att_scores.dtype),
        grid_spec=pltpu.PrefetchScalarGridSpec(
            num_scalar_prefetch=0,
            grid=grid,
            in_specs=[
                pl.BlockSpec((tr, Kp), lambda i: (i, 0)),
                pl.BlockSpec((tr, 1), lambda i: (i, 0)),
            ],
            out_specs=pl.BlockSpec((tr, Kp), lambda i: (i, 0)),
        ),
        compiler_params=pltpu.CompilerParams(
            dimension_semantics=("parallel",),
            vmem_limit_bytes=vmem_limit,
        ),
    )(x2d, a2d)

    return out2d[:R, :K].reshape(B, H, Q, K)


def init_entmax_alpha_params(key, head_count=1):
    """AlphaChooser init: alpha = clamp(1 + sigmoid(randn(head_count)), 1+1e-8, 2)."""
    pre_alpha = jax.random.normal(key, (head_count,), dtype=jnp.float32)
    alpha = 1.0 + jax.nn.sigmoid(pre_alpha)
    return jnp.clip(alpha, 1.0 + 1e-8, 2.0)


def _entmax_bisect_ref(X, alpha, n_iter=N_ITER):
    """Pure-JAX reference (mirrors the PyTorch algorithm) for correctness checking."""
    X = X.astype(jnp.float32)
    alpha = alpha.astype(jnp.float32)
    d = X.shape[-1]
    am1 = alpha - 1.0
    X = X * am1

    def _p(Z):
        Zc = jnp.maximum(Z, 0.0)
        return jnp.where(Zc > 0.0, jnp.power(jnp.maximum(Zc, 1e-30), 1.0 / am1), 0.0)

    max_val = jnp.max(X, axis=-1, keepdims=True)
    tau_lo = max_val - 1.0
    tau_hi = max_val - jnp.power(1.0 / d, am1)
    f_lo = jnp.sum(_p(X - tau_lo), axis=-1, keepdims=True) - 1.0
    dm = tau_hi - tau_lo
    p_m = jnp.zeros_like(X)
    for _ in range(n_iter):
        dm = dm * 0.5
        tau_m = tau_lo + dm
        p_m = _p(X - tau_m)
        f_m = jnp.sum(p_m, axis=-1, keepdims=True) - 1.0
        tau_lo = jnp.where(f_m * f_lo >= 0.0, tau_m, tau_lo)
    return p_m / jnp.sum(p_m, axis=-1, keepdims=True)


if __name__ == "__main__":
    key = jax.random.PRNGKey(0)
    k_param, k_x = jax.random.split(key)

    head_count = 1                       # module default (expand() requires H==1 or H==Q)
    B, H, Q, K = 2, head_count, 8, 16    # small attention-score shape

    alpha = init_entmax_alpha_params(k_param, head_count)
    att_scores = jax.random.normal(k_x, (B, H, Q, K), dtype=jnp.float32)

    p_star = entmax_alpha_forward(att_scores, alpha)
    p_star = jax.block_until_ready(p_star)

    # sanity: rows sum to 1, probabilities are non-negative, matches pure-JAX reference
    row_sums = jnp.sum(p_star, axis=-1)
    assert p_star.shape == (B, H, Q, K)
    assert bool(jnp.all(jnp.abs(row_sums - 1.0) < 1e-4))
    assert bool(jnp.all(p_star >= 0.0))

    expanded_alpha = jnp.broadcast_to(alpha[None, :, None, None], (B, H, Q, 1))
    ref = _entmax_bisect_ref(att_scores, expanded_alpha)
    assert bool(jnp.all(jnp.abs(p_star - ref) < 1e-3))

    # TODO(synk): backward pass (EntmaxBisectFunction.backward) not implemented — forward only.
    print("KERNEL_OK")
</pallas_src>

<mosaic_0001>
module attributes {stable_mosaic.version = 11 : i64} {
  func.func @_entmax_bisect_kernel(%arg0: i32, %arg1: memref<16x128xf32, #tpu.memory_space<vmem>>, %arg2: memref<16x1xf32, #tpu.memory_space<vmem>>, %arg3: memref<16x128xf32, #tpu.memory_space<vmem>>) attributes {dimension_semantics = [#tpu.dimension_semantics<parallel>], iteration_bounds = array<i64: 1>, scalar_prefetch = 0 : i64, scratch_operands = 0 : i64, tpu.core_type = #tpu.core_type<tc>, window_params = [{transform_indices = @transform_0, window_bounds = array<i64: 16, 128>}, {transform_indices = @transform_1, window_bounds = array<i64: 16, 1>}, {transform_indices = @transform_2, window_bounds = array<i64: 16, 128>}]} {
    %c0 = arith.constant 0 : index
    %c0_0 = arith.constant 0 : index
    %0 = vector.load %arg1[%c0, %c0_0] : memref<16x128xf32, #tpu.memory_space<vmem>>, vector<16x128xf32>
    %c0_1 = arith.constant 0 : index
    %c0_2 = arith.constant 0 : index
    %1 = vector.load %arg2[%c0_1, %c0_2] : memref<16x1xf32, #tpu.memory_space<vmem>>, vector<16x1xf32>
    %cst = arith.constant 1.000000e+00 : f32
    %2 = vector.broadcast %cst : f32 to vector<16x1xf32>
    %3 = arith.subf %1, %2 : vector<16x1xf32>
    %cst_3 = arith.constant 1.000000e+00 : f32
    %4 = vector.broadcast %cst_3 : f32 to vector<16x1xf32>
    %5 = arith.divf %4, %3 : vector<16x1xf32>
    %6 = vector.broadcast %3 : vector<16x1xf32> to vector<16x128xf32>
    %7 = arith.mulf %0, %6 : vector<16x128xf32>
    %cst_4 = arith.constant dense<0xFF800000> : vector<16xf32>
    %8 = vector.multi_reduction <maximumf>, %7, %cst_4 [1] : vector<16x128xf32> to vector<16xf32>
    %9 = vector.shape_cast %8 : vector<16xf32> to vector<16x1xf32>
    %cst_5 = arith.constant 1.000000e+00 : f32
    %10 = vector.broadcast %cst_5 : f32 to vector<16x1xf32>
    %11 = arith.subf %9, %10 : vector<16x1xf32>
    %cst_6 = arith.constant 6.250000e-02 : f32
    %12 = math.log %cst_6 : f32
    %13 = vector.broadcast %12 : f32 to vector<16x1xf32>
    %14 = arith.mulf %3, %13 : vector<16x1xf32>
    %15 = math.exp %14 : vector<16x1xf32>
    %16 = arith.subf %9, %15 : vector<16x1xf32>
    %17 = arith.subf %16, %11 : vector<16x1xf32>
    %c0_i32 = arith.constant 0 : i32
    %c30_i32 = arith.constant 30 : i32
    %18 = arith.addi %c0_i32, %c30_i32 : i32
    %c1_i32 = arith.constant 1 : i32
    %19:2 = scf.for %arg4 = %c0_i32 to %18 step %c1_i32 iter_args(%arg5 = %11, %arg6 = %17) -> (vector<16x1xf32>, vector<16x1xf32>)  : i32 {
      %cst_16 = arith.constant 5.000000e-01 : f32
      %46 = vector.broadcast %cst_16 : f32 to vector<16x1xf32>
      %47 = arith.mulf %arg6, %46 : vector<16x1xf32>
      %48 = arith.addf %arg5, %47 : vector<16x1xf32>
      %49 = vector.broadcast %48 : vector<16x1xf32> to vector<16x128xf32>
      %50 = arith.subf %7, %49 : vector<16x128xf32>
      %cst_17 = arith.constant 0.000000e+00 : f32
      %51 = vector.broadcast %cst_17 : f32 to vector<16x128xf32>
      %52 = arith.maximumf %50, %51 : vector<16x128xf32>
      %cst_18 = arith.constant 1.000000e-30 : f32
      %53 = vector.broadcast %cst_18 : f32 to vector<16x128xf32>
      %54 = arith.maximumf %52, %53 : vector<16x128xf32>
      %55 = math.log %54 : vector<16x128xf32>
      %56 = vector.broadcast %5 : vector<16x1xf32> to vector<16x128xf32>
      %57 = arith.mulf %56, %55 : vector<16x128xf32>
      %cst_19 = arith.constant 8.000000e+01 : f32
      %58 = vector.broadcast %cst_19 : f32 to vector<16x128xf32>
      %59 = arith.minimumf %57, %58 : vector<16x128xf32>
      %60 = math.exp %59 : vector<16x128xf32>
      %cst_20 = arith.constant 0.000000e+00 : f32
      %61 = vector.broadcast %cst_20 : f32 to vector<16x128xf32>
      %62 = arith.cmpf ogt, %52, %61 : vector<16x128xf32>
      %cst_21 = arith.constant 0.000000e+00 : f32
      %63 = vector.broadcast %cst_21 : f32 to vector<16x128xf32>
      %64 = arith.select %62, %60, %63 : vector<16x128xi1>, vector<16x128xf32>
      %cst_22 = arith.constant dense<0.000000e+00> : vector<16xf32>
      %65 = vector.multi_reduction <add>, %64, %cst_22 [1] : vector<16x128xf32> to vector<16xf32>
      %66 = vector.shape_cast %65 : vector<16xf32> to vector<16x1xf32>
      %cst_23 = arith.constant 1.000000e+00 : f32
      %67 = vector.broadcast %cst_23 : f32 to vector<16x1xf32>
      %68 = arith.subf %66, %67 : vector<16x1xf32>
      %cst_24 = arith.constant 0.000000e+00 : f32
      %69 = vector.broadcast %cst_24 : f32 to vector<16x1xf32>
      %70 = arith.cmpf oge, %68, %69 : vector<16x1xf32>
      %71 = arith.select %70, %48, %arg5 : vector<16x1xi1>, vector<16x1xf32>
      scf.yield %71, %47 : vector<16x1xf32>, vector<16x1xf32>
    }
    %20 = vector.broadcast %19#0 : vector<16x1xf32> to vector<16x128xf32>
    %21 = arith.subf %7, %20 : vector<16x128xf32>
    %cst_7 = arith.constant 0.000000e+00 : f32
    %22 = vector.broadcast %cst_7 : f32 to vector<16x128xf32>
    %23 = arith.maximumf %21, %22 : vector<16x128xf32>
    %cst_8 = arith.constant 1.000000e-30 : f32
    %24 = vector.broadcast %cst_8 : f32 to vector<16x128xf32>
    %25 = arith.maximumf %23, %24 : vector<16x128xf32>
    %26 = math.log %25 : vector<16x128xf32>
    %27 = vector.broadcast %5 : vector<16x1xf32> to vector<16x128xf32>
    %28 = arith.mulf %27, %26 : vector<16x128xf32>
    %cst_9 = arith.constant 8.000000e+01 : f32
    %29 = vector.broadcast %cst_9 : f32 to vector<16x128xf32>
    %30 = arith.minimumf %28, %29 : vector<16x128xf32>
    %31 = math.exp %30 : vector<16x128xf32>
    %cst_10 = arith.constant 0.000000e+00 : f32
    %32 = vector.broadcast %cst_10 : f32 to vector<16x128xf32>
    %33 = arith.cmpf ogt, %23, %32 : vector<16x128xf32>
    %cst_11 = arith.constant 0.000000e+00 : f32
    %34 = vector.broadcast %cst_11 : f32 to vector<16x128xf32>
    %35 = arith.select %33, %31, %34 : vector<16x128xi1>, vector<16x128xf32>
    %cst_12 = arith.constant dense<0.000000e+00> : vector<16xf32>
    %36 = vector.multi_reduction <add>, %35, %cst_12 [1] : vector<16x128xf32> to vector<16xf32>
    %37 = vector.shape_cast %36 : vector<16xf32> to vector<16x1xf32>
    %38 = tpu.reciprocal %37 {approx = true} : vector<16x1xf32> -> vector<16x1xf32>
    %39 = arith.mulf %37, %38 : vector<16x1xf32>
    %cst_13 = arith.constant 2.000000e+00 : f32
    %40 = vector.broadcast %cst_13 : f32 to vector<16x1xf32>
    %41 = arith.subf %40, %39 : vector<16x1xf32>
    %42 = arith.mulf %38, %41 : vector<16x1xf32>
    %43 = vector.broadcast %42 : vector<16x1xf32> to vector<16x128xf32>
    %44 = arith.mulf %35, %43 : vector<16x128xf32>
    %c0_14 = arith.constant 0 : index
    %c0_15 = arith.constant 0 : index
    %45 = vector.load %arg3[%c0_14, %c0_15] : memref<16x128xf32, #tpu.memory_space<vmem>>, vector<16x128xf32>
    tpu.vector_store %arg3[%c0_14, %c0_15], %44 {strides = array<i32>} : memref<16x128xf32, #tpu.memory_space<vmem>>, vector<16x128xf32>,
    return
  }
  func.func @transform_0(%arg0: i32) -> (i32, i32) {
    %c0_i32 = arith.constant 0 : i32
    %c0_i32_0 = arith.constant 0 : i32
    return %arg0, %c0_i32 : i32, i32
  }
  func.func @transform_1(%arg0: i32) -> (i32, i32) {
    %c0_i32 = arith.constant 0 : i32
    %c0_i32_0 = arith.constant 0 : i32
    return %arg0, %c0_i32 : i32, i32
  }
  func.func @transform_2(%arg0: i32) -> (i32, i32) {
    %c0_i32 = arith.constant 0 : i32
    %c0_i32_0 = arith.constant 0 : i32
    return %arg0, %c0_i32 : i32, i32
  }
}

</mosaic_0001>

<llo_original>
// kernel: entmax_alpha_forward.1
$region0: #{entmax_alpha_forward.1}
  #allocation0 [shape = 'u32[]', space=smem, size = 0x4, offset = 0x4, fixed_abs, tag = 'smem constant byte address 0x4 - core index']
  #allocation1 [shape = 'u32[72,128]{1,0:T(1,128)}', space=vmem, size = 0x9000, scoped, tag = 'internal scratch']
  %s0 = inlined_call_operand.vmem [shape: f32[16,128], index: 0, kind: input, shape index: {}]
  %s1 = inlined_call_operand.vmem [shape: f32[16,1], index: 1, kind: input, shape index: {}]
  %s2 = inlined_call_operand.vmem [shape: f32[16,128], index: 2, kind: output, shape index: {}]
  %s3 = sld [smem:[#allocation0]]
  $region25: #{entmax_alpha_forward.1} parent=0
    _
  %s5 = ssub.s32 1, %s3
  %s6 = scalar_select 0, %s5, %s3
  // Predicated region
  $region2: #{entmax_alpha_forward.1} parent=0 // pred_check
    _
  $region3: #{entmax_alpha_forward.1} parent=0 // pred_check_branch
    %8 = sbr.rel (0) target = $region5
  $region4: #{entmax_alpha_forward.1} parent=0 // pred_region
    _
  $region5: #{entmax_alpha_forward.1} parent=0 // pred_fallthru
    _
  // Predicated region
  $region6: #{entmax_alpha_forward.1} parent=0 // pred_check
    _
  $region7: #{entmax_alpha_forward.1} parent=0 // pred_check_branch
    %10 = sbr.rel (0) target = $region9
  $region8: #{entmax_alpha_forward.1} parent=0 // pred_region
    _
  $region9: #{entmax_alpha_forward.1} parent=0 // pred_fallthru
    _
  %v11 = vld [vmem:[%s0] sm:$0xff]
  %v12 = vld [vmem:[%s0 + $0x8] sm:$0xff]
  %v13 = vld [vmem:[%s1] sm:$0xff]
  %v14 = vld [vmem:[%s1 + $0x8] sm:$0xff]
  %v15 = vsub.f32 %v13, 1.0
  %v16 = vsub.f32 %v14, 1.0
  %v17 = vrcp.pop %v15
  %v18 = vmul.f32 %v15, %v17
  %v19 = vsub.f32 1.0, %v18
  %v20 = vmul.f32 %v17, %v19
  %v21 = vadd.f32 %v17, %v20
  %vm22 = vweird.f32 %v15
  %vm23 = vweird.f32 %v17
  %vm24 = vmor %vm22, %vm23
  %v25 = vsel %vm24, %v17, %v21
  %v26 = vand.u32 2147483647, %v15
  %vm27 = vcmp.eq.f32.partialorder %v26, 8.507059e+37
  %v28 = vand.u32 %v15, 2147483648
  %v29 = vor.u32 1.1754944e-38, %v28
  %v30 = vsel %vm27, %v29, %v25
  %v31 = vmul.f32 1.0, %v30
  %v32 = vrcp.pop %v16
  %v33 = vmul.f32 %v16, %v32
  %v34 = vsub.f32 1.0, %v33
  %v35 = vmul.f32 %v32, %v34
  %v36 = vadd.f32 %v32, %v35
  %vm37 = vweird.f32 %v16
  %vm38 = vweird.f32 %v32
  %vm39 = vmor %vm37, %vm38
  %v40 = vsel %vm39, %v32, %v36
  %v41 = vand.u32 2147483647, %v16
  %vm42 = vcmp.eq.f32.partialorder %v41, 8.507059e+37
  %v43 = vand.u32 %v16, 2147483648
  %v44 = vor.u32 1.1754944e-38, %v43
  %v45 = vsel %vm42, %v44, %v40
  %v46 = vmul.f32 1.0, %v45
  %48 = vset.pattern.permute.xlu0 0
  %49 = vperm.xlu0 %48, %v15
  %v50 = vpop.permute.xlu0 %49
  %53 = vset.pattern.permute.xlu0 0
  %54 = vperm.xlu0 %53, %v16
  %v55 = vpop.permute.xlu0 %54
  %v57 = vmul.f32 %v11, %v50
  %v58 = vmul.f32 %v12, %v55
  %59 = vmax.xlane.f32.xlu0 %v57
  %v60 = vpop.xlane.xlu0 %59
  %61 = vmax.xlane.f32.xlu0 %v58
  %v62 = vpop.xlane.xlu0 %61
  %v63 = vsub.f32 %v60, 1.0
  %v64 = vsub.f32 %v62, 1.0
  %v65 = vmul.f32 %v15, -2.7725887
  %v66 = vmul.f32 %v16, -2.7725887
  %v67 = vmul.f32 %v65, 1.442695
  %v68 = vpow.pop %v67
  %v69 = vmul.f32 %v66, 1.442695
  %v70 = vpow.pop %v69
  %v71 = vsub.f32 %v60, %v68
  %v72 = vsub.f32 %v62, %v70
  %v73 = vsub.f32 %v71, %v63
  %v74 = vsub.f32 %v72, %v64
  loop: start=0, step=1, limit=30
  $region10: #{entmax_alpha_forward.1} parent=0 // loop_pre_header
    _
  $region11: #{entmax_alpha_forward.1} parent=0 // loop_header
    %s76 = sphi 0, %s80
    %p77 = scmp.ge.s32.totalorder %s76, 30
    %v81 = vphi %v63, %v139
    %v82 = vphi %v64, %v140
    %v83 = vphi %v73, %v85
    %v84 = vphi %v74, %v86
  $region12: #{entmax_alpha_forward.1} parent=0 // loop_header_branch
    %79 = sbr.rel (%p77) target = $region16
  $region13: #{entmax_alpha_forward.1} parent=0 // loop_body
    %v85 = vmul.f32 %v83, 0.5
    %v86 = vmul.f32 %v84, 0.5
    %v87 = vadd.f32 %v81, %v85
    %v88 = vadd.f32 %v82, %v86
    %90 = vset.pattern.permute.xlu0 0
    %91 = vperm.xlu0 %90, %v87
    %v92 = vpop.permute.xlu0 %91
    %95 = vset.pattern.permute.xlu0 0
    %96 = vperm.xlu0 %95, %v88
    %v97 = vpop.permute.xlu0 %96
    %v99 = vsub.f32 %v57, %v92
    %v100 = vsub.f32 %v58, %v97
    %v101 = vmax.f32 %v99, 0.0
    %v102 = vmax.f32 %v100, 0.0
    %v103 = vmax.f32 %v101, 1e-30
    %v104 = vmax.f32 %v102, 1e-30
    %v105 = vlog2.pop %v103
    %v106 = vmul.f32 %v105, 0.6931472
    %v107 = vlog2.pop %v104
    %v108 = vmul.f32 %v107, 0.6931472
    %110 = vset.pattern.permute.xlu0 0
    %111 = vperm.xlu0 %110, %v31
    %v112 = vpop.permute.xlu0 %111
    %115 = vset.pattern.permute.xlu0 0
    %116 = vperm.xlu0 %115, %v46
    %v117 = vpop.permute.xlu0 %116
    %v119 = vmul.f32 %v112, %v106
    %v120 = vmul.f32 %v117, %v108
    %v121 = vmin.f32 %v119, 80.0
    %v122 = vmin.f32 %v120, 80.0
    %v123 = vmul.f32 %v121, 1.442695
    %v124 = vpow.pop %v123
    %v125 = vmul.f32 %v122, 1.442695
    %v126 = vpow.pop %v125
    %vm127 = vcmp.gt.f32.partialorder %v101, 0.0
    %vm128 = vcmp.gt.f32.partialorder %v102, 0.0
    %v129 = vsel %vm127, %v124, 0.0
    %v130 = vsel %vm128, %v126, 0.0
    %131 = vadd.xlane.f32.xlu0 %v129
    %v132 = vpop.xlane.xlu0 %131
    %133 = vadd.xlane.f32.xlu0 %v130
    %v134 = vpop.xlane.xlu0 %133
    %v135 = vsub.f32 %v132, 1.0
    %v136 = vsub.f32 %v134, 1.0
    %vm137 = vcmp.ge.f32.partialorder %v135, 0.0
    %vm138 = vcmp.ge.f32.partialorder %v136, 0.0
    %v139 = vsel %vm137, %v87, %v81
    %v140 = vsel %vm138, %v88, %v82
  $region14: #{entmax_alpha_forward.1} parent=0 // loop_footer
    %s80 = sadd.s32 1, %s76
  $region15: #{entmax_alpha_forward.1} parent=0 // loop_footer_branch
    %75 = sbr.rel target = $region11
  $region16: #{entmax_alpha_forward.1} parent=0 // loop_exit
    _
  %142 = vset.pattern.permute.xlu0 0
  %143 = vperm.xlu0 %142, %v81
  %v144 = vpop.permute.xlu0 %143
  %147 = vset.pattern.permute.xlu0 0
  %148 = vperm.xlu0 %147, %v82
  %v149 = vpop.permute.xlu0 %148
  %v151 = vsub.f32 %v57, %v144
  %v152 = vsub.f32 %v58, %v149
  %v153 = vmax.f32 %v151, 0.0
  %v154 = vmax.f32 %v152, 0.0
  %v155 = vmax.f32 %v153, 1e-30
  %v156 = vmax.f32 %v154, 1e-30
  %v157 = vlog2.pop %v155
  %v158 = vmul.f32 %v157, 0.6931472
  %v159 = vlog2.pop %v156
  %v160 = vmul.f32 %v159, 0.6931472
  %162 = vset.pattern.permute.xlu0 0
  %163 = vperm.xlu0 %162, %v31
  %v164 = vpop.permute.xlu0 %163
  %167 = vset.pattern.permute.xlu0 0
  %168 = vperm.xlu0 %167, %v46
  %v169 = vpop.permute.xlu0 %168
  %v171 = vmul.f32 %v164, %v158
  %v172 = vmul.f32 %v169, %v160
  %v173 = vmin.f32 %v171, 80.0
  %v174 = vmin.f32 %v172, 80.0
  %v175 = vmul.f32 %v173, 1.442695
  %v176 = vpow.pop %v175
  %v177 = vmul.f32 %v174, 1.442695
  %v178 = vpow.pop %v177
  %vm179 = vcmp.gt.f32.partialorder %v153, 0.0
  %vm180 = vcmp.gt.f32.partialorder %v154, 0.0
  %v181 = vsel %vm179, %v176, 0.0
  %v182 = vsel %vm180, %v178, 0.0
  %183 = vadd.xlane.f32.xlu0 %v181
  %v184 = vpop.xlane.xlu0 %183
  %185 = vadd.xlane.f32.xlu0 %v182
  %v186 = vpop.xlane.xlu0 %185
  %v187 = vrcp.pop %v184
  %v188 = vrcp.pop %v186
  %v189 = vmul.f32 %v184, %v187
  %v190 = vmul.f32 %v186, %v188
  %v191 = vsub.f32 2.0, %v189
  %v192 = vsub.f32 2.0, %v190
  %v193 = vmul.f32 %v187, %v191
  %v194 = vmul.f32 %v188, %v192
  %v195 = vmul.f32 %v181, %v193
  %v196 = vmul.f32 %v182, %v194
  %197 = vst [vmem:[%s2] sm:$0xff] %v195
  %198 = vst [vmem:[%s2 + $0x8] sm:$0xff] %v196
  // Predicated region
  $region17: #{entmax_alpha_forward.1} parent=0 // pred_check
    _
  $region18: #{entmax_alpha_forward.1} parent=0 // pred_check_branch
    %200 = sbr.rel (0) target = $region20
  $region19: #{entmax_alpha_forward.1} parent=0 // pred_region
    _
  $region20: #{entmax_alpha_forward.1} parent=0 // pred_fallthru
    _
  // Predicated region
  $region21: #{entmax_alpha_forward.1} parent=0 // pred_check
    _
  $region22: #{entmax_alpha_forward.1} parent=0 // pred_check_branch
    %202 = sbr.rel (0) target = $region24
  $region23: #{entmax_alpha_forward.1} parent=0 // pred_region
    _
  $region24: #{entmax_alpha_forward.1} parent=0 // pred_fallthru
    _

</llo_original>
